<compile_context>
chip_gen: v7x
topology: tpu7x:2x2x1
jax: 0.10.0
libtpu: 0.0.40
codegen_flags: <defaults>
</compile_context>

<pallas_src>
import jax
import jax.numpy as jnp
from jax.experimental import pallas as pl
from jax.experimental.pallas import tpu as pltpu


def _make_leaky_relu_kernel(slope: float):
    def kernel(x_ref, o_ref):
        x = x_ref[...]
        # Exact match of the PyTorch reference: where(x > 0, x, x * slope).
        o_ref[...] = jnp.where(x > 0, x, x * slope)

    return kernel


def _vmem_and_tile_target():
    """Generation-aware (VMEM-capacity-aware) budgets.

    Returns (vmem_limit_bytes, target_tile_bytes).  VMEM use of this kernel is
    ~4x the tile (input + output, each double-buffered), so an 8 MiB tile keeps
    us around 32 MiB, safely under the 48 MiB scoped limit on every generation
    (v5e/v6e: 128 MiB physical, v7x: 64 MiB physical per TC).
    """
    try:
        vmem_cap = int(pltpu.get_tpu_info().vmem_capacity_bytes)
    except Exception:
        vmem_cap = 64 * 1024 * 1024  # conservative: v7x per-TC VMEM
    vmem_limit = min(48 * 1024 * 1024, (vmem_cap * 3) // 4)
    target_tile_bytes = min(8 * 1024 * 1024, vmem_limit // 5)
    return vmem_limit, target_tile_bytes


def _leaky_relu_flat_pallas(flat: jax.Array, slope: float) -> jax.Array:
    """Lane-dense Pallas LeakyReLU on a 1-D array whose size is a multiple of 128."""
    total = flat.shape[0]
    dtype = flat.dtype
    itemsize = dtype.itemsize

    # Widest lane-dense width (multiple of 128) that divides the flat size.
    lanes = 128
    for cand in (2048, 1024, 512, 256):
        if total % cand == 0:
            lanes = cand
            break
    rows = total // lanes
    x2 = flat.reshape(rows, lanes)

    vmem_limit, target_tile_bytes = _vmem_and_tile_target()

    # Dtype-aware sublane rounding: 8 for f32, 16 for bf16/f16, 32 for int8/fp8.
    sub = max(8, 32 // itemsize)
    tr = max(1, target_tile_bytes // (lanes * itemsize))
    if tr >= rows:
        tr = rows  # single full-extent block (block shape == array shape is allowed)
    else:
        tr = max(sub, (tr // sub) * sub)

    grid = (pl.cdiv(rows, tr),)

    kernel = _make_leaky_relu_kernel(float(slope))
    cost = pl.CostEstimate(
        flops=2 * total,  # one mul + one select per element
        transcendentals=0,
        bytes_accessed=2 * total * itemsize,  # one full read + one full write
    )

    out2 = pl.pallas_call(
        kernel,
        out_shape=jax.ShapeDtypeStruct((rows, lanes), dtype),
        grid_spec=pltpu.PrefetchScalarGridSpec(
            num_scalar_prefetch=0,
            grid=grid,
            in_specs=[pl.BlockSpec((tr, lanes), lambda i: (i, 0))],
            out_specs=pl.BlockSpec((tr, lanes), lambda i: (i, 0)),
        ),
        compiler_params=pltpu.CompilerParams(
            dimension_semantics=("parallel",),
            vmem_limit_bytes=vmem_limit,
        ),
        input_output_aliases={0: 0},
        cost_estimate=cost,
    )(x2)

    return out2.reshape(-1)


def leaky_relu_pallas(x: jax.Array, slope: float = 0.01) -> jax.Array:
    """Applies torch.where(x > 0, x, x * slope) via a lane-dense Pallas TPU kernel."""
    if not jnp.issubdtype(x.dtype, jnp.floating):
        raise TypeError(
            f"leaky_relu_pallas expects a floating dtype (reference module is "
            f"float-only); got {x.dtype}"
        )

    orig_shape = x.shape
    total = x.size
    if total == 0:
        return x

    flat = x.reshape(-1)
    rem = total % 128
    if rem == 0:
        return _leaky_relu_flat_pallas(flat, slope).reshape(orig_shape)

    # Rare path (flat size not a multiple of 128): run the kernel on the
    # divisible prefix and handle the <=127-element tail with plain jnp —
    # avoids a full-array pad + slice pair around the kernel.
    main = total - rem
    tail = flat[main:]
    tail_out = jnp.where(tail > 0, tail, tail * slope).astype(x.dtype)
    if main == 0:
        return tail_out.reshape(orig_shape)
    head_out = _leaky_relu_flat_pallas(flat[:main], slope)
    return jnp.concatenate([head_out, tail_out]).reshape(orig_shape)


class ModelMyPallas:
    """JAX/Pallas equivalent of the PyTorch Model_my (custom LeakyReLU, slope=0.01)."""

    def __init__(self, slope: float = 0.01):
        self.slope = slope  # no learnable parameters in the reference module

    def __call__(self, x):
        return leaky_relu_pallas(x, self.slope)


if __name__ == "__main__":
    key = jax.random.PRNGKey(0)
    # NCHW input, small shape consistent with a typical conv-style module input.
    x = jax.random.normal(key, (2, 4, 16, 16), dtype=jnp.float32)

    model = ModelMyPallas(slope=0.01)
    out = model(x)
    out = jax.block_until_ready(out)

    # Correctness check against the pure-JAX reference of torch.where(x>0, x, x*slope).
    ref = jnp.where(x > 0, x, x * 0.01)
    assert out.shape == x.shape and out.dtype == x.dtype
    assert jnp.array_equal(out, ref), "mismatch vs reference"

    print("KERNEL_OK")
</pallas_src>

<mosaic_0001>
module attributes {stable_mosaic.version = 11 : i64} {
  func.func @kernel(%arg0: i32, %arg1: memref<1x2048xf32, #tpu.memory_space<vmem>>, %arg2: memref<1x2048xf32, #tpu.memory_space<vmem>>) attributes {dimension_semantics = [#tpu.dimension_semantics<parallel>], iteration_bounds = array<i64: 1>, scalar_prefetch = 0 : i64, scratch_operands = 0 : i64, tpu.core_type = #tpu.core_type<tc>, window_params = [{transform_indices = @transform_0, window_bounds = array<i64: 1, 2048>}, {transform_indices = @transform_1, window_bounds = array<i64: 1, 2048>}]} {
    %c0 = arith.constant 0 : index
    %c0_0 = arith.constant 0 : index
    %0 = vector.load %arg1[%c0, %c0_0] : memref<1x2048xf32, #tpu.memory_space<vmem>>, vector<1x2048xf32>
    %cst = arith.constant 0.000000e+00 : f32
    %1 = vector.broadcast %cst : f32 to vector<1x2048xf32>
    %2 = arith.cmpf ogt, %0, %1 : vector<1x2048xf32>
    %cst_1 = arith.constant 0.00999999977 : f32
    %3 = vector.broadcast %cst_1 : f32 to vector<1x2048xf32>
    %4 = arith.mulf %0, %3 : vector<1x2048xf32>
    %5 = arith.select %2, %0, %4 : vector<1x2048xi1>, vector<1x2048xf32>
    %c0_2 = arith.constant 0 : index
    %c0_3 = arith.constant 0 : index
    %6 = vector.load %arg2[%c0_2, %c0_3] : memref<1x2048xf32, #tpu.memory_space<vmem>>, vector<1x2048xf32>
    tpu.vector_store %arg2[%c0_2, %c0_3], %5 {strides = array<i32>} : memref<1x2048xf32, #tpu.memory_space<vmem>>, vector<1x2048xf32>,
    return
  }
  func.func @transform_0(%arg0: i32) -> (i32, i32) {
    %c0_i32 = arith.constant 0 : i32
    %c0_i32_0 = arith.constant 0 : i32
    return %arg0, %c0_i32 : i32, i32
  }
  func.func @transform_1(%arg0: i32) -> (i32, i32) {
    %c0_i32 = arith.constant 0 : i32
    %c0_i32_0 = arith.constant 0 : i32
    return %arg0, %c0_i32 : i32, i32
  }
}

</mosaic_0001>

<llo_original>
// kernel: tpu_custom_call.1
$region0: #{tpu_custom_call.1}
  #allocation0 [shape = 'u32[]', space=smem, size = 0x4, offset = 0x4, fixed_abs, tag = 'smem constant byte address 0x4 - core index']
  #allocation1 [shape = 'u32[144,128]{1,0:T(1,128)}', space=vmem, size = 0x12000, scoped, tag = 'internal scratch']
  %s0 = inlined_call_operand.hbm [shape: f32[1,2048], index: 0, kind: input, shape index: {}, may-alias: {0,1}]
  %s1 = inlined_call_operand.hbm [shape: f32[1,2048], index: 1, kind: output, shape index: {}, may-alias: {0,1}]
  %s2 = sld [smem:[#allocation0]]
  $region18: #{tpu_custom_call.1} parent=0
    _
  %s4 = ssub.s32 1, %s2
  %s5 = scalar_select 0, %s4, %s2
  $region1: #{tpu_custom_call.1} parent=0
    #allocation2 [shape = 'u8[8192]{0}', space=vmem, size = 0x2000, scoped, tag = 'input window, operand 0, single buffered']
    #allocation3 [shape = 's32[1]{0}', space=sflag, size = 0x4, scoped, tag = 'scoped memory for tpu_custom_call.1']
    #allocation4 [shape = 's32[1]{0}', space=sflag, size = 0x4, scoped, tag = 'scoped memory for tpu_custom_call.1']
    #allocation5 [shape = 'u8[8192]{0}', space=vmem, size = 0x2000, scoped, tag = 'output window, operand 0, single buffered']
    %6 = vsyncpa [#allocation3], 0
    %7 = vsyncpa [#allocation4], 0
    // Predicated region
    $region2: #{tpu_custom_call.1} parent=1 // pred_check
      _
    $region3: #{tpu_custom_call.1} parent=1 // pred_check_branch
      %9 = sbr.rel (0) target = $region5
    $region4: #{tpu_custom_call.1} parent=1 // pred_region
      %s11 = ssub.s32 256, 256
      %12 = vsyncadd [#allocation3], %s11
      %s14 = sshll.u32 [#allocation2], 4
      %s15 = int_to_ptr.vmem [resolvable:$true] %s14
      %17 = dma.hbm_to_vmem [thread:$0]  %s0, 256, %s15, [#allocation3]
    $region5: #{tpu_custom_call.1} parent=1 // pred_fallthru
      _
    // Predicated region
    $region6: #{tpu_custom_call.1} parent=1 // pred_check
      _
    $region7: #{tpu_custom_call.1} parent=1 // pred_check_branch
      %19 = sbr.rel (0) target = $region9
    $region8: #{tpu_custom_call.1} parent=1 // pred_region
      %20 = dma.done [#allocation3], 256
    $region9: #{tpu_custom_call.1} parent=1 // pred_fallthru
      _
    %v21 = vld [vmem:[#allocation2] sm:$0xff]
    %v22 = vld [vmem:[#allocation2 + $0x8] sm:$0xff]
    %vm23 = vcmp.gt.f32.partialorder %v21, 0.0
    %vm24 = vcmp.gt.f32.partialorder %v22, 0.0
    %v25 = vmul.f32 %v21, 0.01
    %v26 = vmul.f32 %v22, 0.01
    %v27 = vsel %vm23, %v21, %v25
    %v28 = vsel %vm24, %v22, %v26
    %29 = vst [vmem:[#allocation5] sm:$0xff] %v27
    %30 = vst [vmem:[#allocation5 + $0x8] sm:$0xff] %v28
    // Predicated region
    $region10: #{tpu_custom_call.1} parent=1 // pred_check
      _
    $region11: #{tpu_custom_call.1} parent=1 // pred_check_branch
      %32 = sbr.rel (0) target = $region13
    $region12: #{tpu_custom_call.1} parent=1 // pred_region
      %s34 = ssub.s32 256, 256
      %35 = vsyncadd [#allocation4], %s34
      %s37 = sshll.u32 [#allocation5], 4
      %s38 = int_to_ptr.vmem [resolvable:$true] %s37
      %40 = dma.vmem_to_hbm [thread:$0]  %s38, 256, %s1, [#allocation4]
    $region13: #{tpu_custom_call.1} parent=1 // pred_fallthru
      _
    // Predicated region
    $region14: #{tpu_custom_call.1} parent=1 // pred_check
      _
    $region15: #{tpu_custom_call.1} parent=1 // pred_check_branch
      %42 = sbr.rel (0) target = $region17
    $region16: #{tpu_custom_call.1} parent=1 // pred_region
      %43 = dma.done [#allocation4], 256
    $region17: #{tpu_custom_call.1} parent=1 // pred_fallthru
      _
    %44 = vsyncpa [#allocation3], 1
    %45 = vsyncpa [#allocation4], 1

</llo_original>
